<compile_context>
chip_gen: v7x
topology: tpu7x:2x2x1
jax: 0.10.0
libtpu: 0.0.40
codegen_flags: <defaults>
</compile_context>

<pallas_src>
import jax
import jax.numpy as jnp
from jax.experimental import pallas as pl
from jax.experimental.pallas import tpu as pltpu

D_IN = 32    # encoder input features
D_HID = 64   # encoder output / regressor input features
D_OUT = 1    # regressor output features


def _composite_kernel(x_ref, w1t_ref, b1_ref, w2_ref, b2_ref, o_ref):
    # x_ref:   (TB, D_IN)    f32   (batch-major tile of x)
    # w1t_ref: (D_HID, D_IN) bf16  (encoder weight, transposed, MXU feed)
    # b1_ref:  (D_HID, 1)    f32
    # w2_ref:  (D_HID, 1)    f32   (regressor weight column)
    # b2_ref:  (1, 1)        f32   (SMEM scalar)
    # o_ref:   (1, TB)       f32   (lane-dense output row)

    x_bf = x_ref[...].astype(jnp.bfloat16)   # MXU feed only; elementwise stays f32

    # z^T = W1 @ x^T : contract the D_IN axis of both operands ("q @ k.T" form),
    # f32 accumulation on the MXU.  Result keeps the batch on the lane axis.
    zt = jax.lax.dot_general(
        w1t_ref[...], x_bf,
        dimension_numbers=(((1,), (1,)), ((), ())),
        preferred_element_type=jnp.float32,
    )                                                    # (D_HID, TB) f32

    zt = jnp.maximum(zt + b1_ref[...], 0.0)              # bias + ReLU in f32 (VPU)

    # Regressor (D_OUT == 1): VPU multiply + cross-sublane reduce, no 2nd matmul.
    y = jnp.sum(zt * w2_ref[...], axis=0, keepdims=True) + b2_ref[0, 0]   # (1, TB)

    o_ref[...] = y.astype(o_ref.dtype)


def en_regr_composite(x, w1, b1, w2, b2, *, tb=512):
    """y_hat = regressor(encoder(x)) with encoder=Linear+ReLU, regressor=Linear.

    x:  (B, D_IN) f32
    w1: (D_IN, D_HID), b1: (D_HID,)
    w2: (D_HID, D_OUT=1), b2: (D_OUT,)
    returns (B, D_OUT) f32
    """
    B, d_in = x.shape
    d_hid = w1.shape[1]
    d_out = w2.shape[1]
    assert d_out == 1, "kernel specialises the D_OUT == 1 regressor"
    tb = min(tb, B)
    assert B % tb == 0, "demo kernel requires B % tb == 0"

    # Tiny layout plumbing outside the kernel (weights only).
    w1t = jnp.asarray(w1).T.astype(jnp.bfloat16)          # (D_HID, D_IN)
    b1c = jnp.asarray(b1).reshape(d_hid, 1).astype(jnp.float32)
    w2c = jnp.asarray(w2).reshape(d_hid, 1).astype(jnp.float32)
    b2s = jnp.asarray(b2).reshape(1, 1).astype(jnp.float32)

    grid = (B // tb,)

    y_row = pl.pallas_call(
        _composite_kernel,
        out_shape=jax.ShapeDtypeStruct((1, B), jnp.float32),
        grid=grid,
        in_specs=[
            pl.BlockSpec((tb, d_in), lambda i: (i, 0),
                         memory_space=pltpu.MemorySpace.VMEM),
            pl.BlockSpec((d_hid, d_in), lambda i: (0, 0),
                         memory_space=pltpu.MemorySpace.VMEM),
            pl.BlockSpec((d_hid, 1), lambda i: (0, 0),
                         memory_space=pltpu.MemorySpace.VMEM),
            pl.BlockSpec((d_hid, 1), lambda i: (0, 0),
                         memory_space=pltpu.MemorySpace.VMEM),
            pl.BlockSpec((1, 1), lambda i: (0, 0),
                         memory_space=pltpu.MemorySpace.SMEM),
        ],
        out_specs=pl.BlockSpec((1, tb), lambda i: (0, i),
                               memory_space=pltpu.MemorySpace.VMEM),
        compiler_params=pltpu.CompilerParams(
            dimension_semantics=("parallel",),
        ),
    )(x, w1t, b1c, w2c, b2s)

    return y_row.reshape(B, d_out)   # back to the module's (B, D_OUT) layout


def reference(x, w1, b1, w2, b2):
    z = jnp.maximum(x @ w1 + b1[None, :], 0.0)
    return z @ w2 + b2[None, :]


if __name__ == "__main__":
    B = 1024   # multiple of the 512-row tile; still tiny (128 KB of input)
    key = jax.random.PRNGKey(0)
    kx, k1, kb1, k2, kb2 = jax.random.split(key, 5)

    x = jax.random.normal(kx, (B, D_IN), dtype=jnp.float32)
    w1 = jax.random.normal(k1, (D_IN, D_HID), dtype=jnp.float32) / jnp.sqrt(D_IN)
    b1 = jax.random.normal(kb1, (D_HID,), dtype=jnp.float32) * 0.01
    w2 = jax.random.normal(k2, (D_HID, D_OUT), dtype=jnp.float32) / jnp.sqrt(D_HID)
    b2 = jax.random.normal(kb2, (D_OUT,), dtype=jnp.float32) * 0.01

    y = en_regr_composite(x, w1, b1, w2, b2, tb=512)
    jax.block_until_ready(y)

    y_ref = reference(x, w1, b1, w2, b2)
    assert y.shape == (B, D_OUT)
    # bf16 MXU feed loosens the tolerance vs. the full-f32 reference.
    assert jnp.allclose(y, y_ref, atol=2e-2, rtol=2e-2), \
        float(jnp.max(jnp.abs(y - y_ref)))

    print("KERNEL_OK")
</pallas_src>

<mosaic_0001>
module attributes {stable_mosaic.version = 11 : i64} {
  func.func @_composite_kernel(%arg0: i32, %arg1: memref<512x32xf32, #tpu.memory_space<vmem>>, %arg2: memref<64x32xbf16, #tpu.memory_space<vmem>>, %arg3: memref<64x1xf32, #tpu.memory_space<vmem>>, %arg4: memref<64x1xf32, #tpu.memory_space<vmem>>, %arg5: memref<1x1xf32, #tpu.memory_space<smem>>, %arg6: memref<1x512xf32, #tpu.memory_space<vmem>>) attributes {dimension_semantics = [#tpu.dimension_semantics<parallel>], iteration_bounds = array<i64: 2>, scalar_prefetch = 0 : i64, scratch_operands = 0 : i64, tpu.core_type = #tpu.core_type<tc>, window_params = [{transform_indices = @transform_0, window_bounds = array<i64: 512, 32>}, {pipeline_mode = #tpu.pipeline_mode<synchronous>, transform_indices = @transform_1, window_bounds = array<i64: 64, 32>}, {pipeline_mode = #tpu.pipeline_mode<synchronous>, transform_indices = @transform_2, window_bounds = array<i64: 64, 1>}, {pipeline_mode = #tpu.pipeline_mode<synchronous>, transform_indices = @transform_3, window_bounds = array<i64: 64, 1>}, {transform_indices = @transform_4, window_bounds = array<i64: 1, 1>}, {transform_indices = @transform_5, window_bounds = array<i64: 1, 512>}]} {
    %c0 = arith.constant 0 : index
    %c0_0 = arith.constant 0 : index
    %0 = vector.load %arg1[%c0, %c0_0] : memref<512x32xf32, #tpu.memory_space<vmem>>, vector<512x32xf32>
    %1 = arith.truncf %0 : vector<512x32xf32> to vector<512x32xbf16>
    %c0_1 = arith.constant 0 : index
    %c0_2 = arith.constant 0 : index
    %2 = vector.load %arg2[%c0_1, %c0_2] : memref<64x32xbf16, #tpu.memory_space<vmem>>, vector<64x32xbf16>
    %cst = arith.constant dense<0.000000e+00> : vector<64x512xf32>
    %3 = tpu.matmul %2, %1, %cst {dimension_numbers = #tpu.dot_dimension_numbers<[1], [1], [0], [0], [0, 0, 1, 0], [], []>} : vector<64x32xbf16>, vector<512x32xbf16>, vector<64x512xf32> -> vector<64x512xf32>
    %c0_3 = arith.constant 0 : index
    %c0_4 = arith.constant 0 : index
    %4 = vector.load %arg3[%c0_3, %c0_4] : memref<64x1xf32, #tpu.memory_space<vmem>>, vector<64x1xf32>
    %5 = vector.broadcast %4 : vector<64x1xf32> to vector<64x512xf32>
    %6 = arith.addf %3, %5 : vector<64x512xf32>
    %cst_5 = arith.constant 0.000000e+00 : f32
    %7 = vector.broadcast %cst_5 : f32 to vector<64x512xf32>
    %8 = arith.maximumf %6, %7 : vector<64x512xf32>
    %c0_6 = arith.constant 0 : index
    %c0_7 = arith.constant 0 : index
    %9 = vector.load %arg4[%c0_6, %c0_7] : memref<64x1xf32, #tpu.memory_space<vmem>>, vector<64x1xf32>
    %10 = vector.broadcast %9 : vector<64x1xf32> to vector<64x512xf32>
    %11 = arith.mulf %8, %10 : vector<64x512xf32>
    %cst_8 = arith.constant dense<0.000000e+00> : vector<512xf32>
    %12 = vector.multi_reduction <add>, %11, %cst_8 [0] : vector<64x512xf32> to vector<512xf32>
    %13 = vector.shape_cast %12 : vector<512xf32> to vector<1x512xf32>
    %c0_9 = arith.constant 0 : index
    %c0_10 = arith.constant 0 : index
    %14 = memref.load %arg5[%c0_9, %c0_10] : memref<1x1xf32, #tpu.memory_space<smem>>
    %15 = vector.broadcast %14 : f32 to vector<1x512xf32>
    %16 = arith.addf %13, %15 : vector<1x512xf32>
    %c0_11 = arith.constant 0 : index
    %c0_12 = arith.constant 0 : index
    %17 = vector.load %arg6[%c0_11, %c0_12] : memref<1x512xf32, #tpu.memory_space<vmem>>, vector<1x512xf32>
    tpu.vector_store %arg6[%c0_11, %c0_12], %16 {strides = array<i32>} : memref<1x512xf32, #tpu.memory_space<vmem>>, vector<1x512xf32>,
    return
  }
  func.func @transform_0(%arg0: i32) -> (i32, i32) {
    %c0_i32 = arith.constant 0 : i32
    %c0_i32_0 = arith.constant 0 : i32
    return %arg0, %c0_i32 : i32, i32
  }
  func.func @transform_1(%arg0: i32) -> (i32, i32) {
    %c0_i32 = arith.constant 0 : i32
    %c0_i32_0 = arith.constant 0 : i32
    %c0_i32_1 = arith.constant 0 : i32
    return %c0_i32, %c0_i32_0 : i32, i32
  }
  func.func @transform_2(%arg0: i32) -> (i32, i32) {
    %c0_i32 = arith.constant 0 : i32
    %c0_i32_0 = arith.constant 0 : i32
    %c0_i32_1 = arith.constant 0 : i32
    return %c0_i32, %c0_i32_0 : i32, i32
  }
  func.func @transform_3(%arg0: i32) -> (i32, i32) {
    %c0_i32 = arith.constant 0 : i32
    %c0_i32_0 = arith.constant 0 : i32
    %c0_i32_1 = arith.constant 0 : i32
    return %c0_i32, %c0_i32_0 : i32, i32
  }
  func.func @transform_4(%arg0: i32) -> (i32, i32) {
    %c0_i32 = arith.constant 0 : i32
    %c0_i32_0 = arith.constant 0 : i32
    %c0_i32_1 = arith.constant 0 : i32
    return %c0_i32, %c0_i32_0 : i32, i32
  }
  func.func @transform_5(%arg0: i32) -> (i32, i32) {
    %c0_i32 = arith.constant 0 : i32
    %c0_i32_0 = arith.constant 0 : i32
    return %c0_i32, %arg0 : i32, i32
  }
}

</mosaic_0001>

<llo_original>
// kernel: tpu_custom_call.1
$region0: #{tpu_custom_call.1}
  #allocation0 [shape = 'u32[]', space=smem, size = 0x4, offset = 0x4, fixed_abs, tag = 'smem constant byte address 0x4 - core index']
  #allocation1 [shape = 'u32[144,128]{1,0:T(1,128)}', space=vmem, size = 0x12000, scoped, tag = 'internal scratch']
  #allocation2 [shape = 'f32[1,1]{1,0:T(1,128)S(6)}', space=smem, size = 0x200, scoped, tag = 'scoped memory for tpu_custom_call.1']
  %s0 = inlined_call_operand.vmem [shape: f32[1024,32], index: 0, kind: input, shape index: {}]
  %s1 = inlined_call_operand.vmem [shape: bf16[64,32], index: 1, kind: input, shape index: {}]
  %s2 = inlined_call_operand.vmem [shape: f32[64,1], index: 2, kind: input, shape index: {}]
  %s3 = inlined_call_operand.vmem [shape: f32[64,1], index: 3, kind: input, shape index: {}]
  %s4 = inlined_call_operand.<no memory space> [shape: f32[1,1], index: 4, kind: input, shape index: {}]
  %s5 = inlined_call_operand.hbm [shape: f32[1,1024], index: 5, kind: output, shape index: {}]
  %s6 = sld [smem:[#allocation0]]
  $region53: #{tpu_custom_call.1} parent=0
    _
  %s8 = ssub.s32 1, %s6
  %s9 = scalar_select 0, %s8, %s6
  %10 = sst [smem:[#allocation2]] %s4
  $region1: #{tpu_custom_call.1} parent=0
    #allocation3 [shape = 'u8[4096]{0}', space=vmem, size = 0x1000, scoped, tag = 'output window, operand 0']
    #allocation4 [shape = 's32[2]{0}', space=sflag, size = 0x8, scoped, tag = 'scoped memory for tpu_custom_call.1']
    %11 = vsyncpa [#allocation4], 0
    %s12 = scalar_lea.sflag [#allocation4], 1
    %13 = vsyncpa %s12, 0
    loop: start=0, step=1, limit=4
    $region2: #{tpu_custom_call.1} parent=1 // loop_pre_header
      _
    $region3: #{tpu_custom_call.1} parent=1 // loop_header
      %s15 = sphi 0, %s19
      %p16 = scmp.ge.s32.totalorder %s15, 4
      %s25 = sphi 0, %s27
      %s28 = sphi 0, %s25
      %s29 = sphi 0, %s28
      %s45 = sphi 0, %s29
      %s49 = sphi 0, %s49
      %s51 = sphi 0, %s49
      %s52 = sphi 0, %s51
      %s66 = sphi 0, %s52
      %s70 = sphi 0, %s70
      %s72 = sphi 0, %s70
      %s73 = sphi 0, %s72
      %s87 = sphi 0, %s73
      %s91 = sphi 0, %s91
      %s93 = sphi 0, %s91
      %s94 = sphi 0, %s93
      %s108 = sphi 0, %s94
      %s112 = sphi 0, %s112
      %s114 = sphi 0, %s112
      %s115 = sphi 0, %s114
      %s129 = sphi 0, %s115
      %s135 = sphi 0, %s137
      %s138 = sphi 0, %s135
      %s139 = sphi 0, %s138
      %s155 = sphi 0, %s139
    $region4: #{tpu_custom_call.1} parent=1 // loop_header_branch
      %18 = sbr.rel (%p16) target = $region8
    $region5: #{tpu_custom_call.1} parent=1 // loop_body
      %s20 = ssub.s32 %s15, 1
      %s21 = ssub.s32 %s15, 2
      %s22 = sadd.s32 %s15, 1
      %s23 = ssub.s32 %s15, %s22
      %p24 = scmp.eq.s32.totalorder %s23, 0
      %s26 = sadd.s32 %s25, 1
      %s27 = scalar_select %p24, %s25, %s26
      %p30 = pneg %p24
      %p31 = scmp.eq.s32.totalorder %s15, 1
      %p32 = por %p30, %p31
      %p33 = scmp.ne.s32.totalorder %s25, %s28
      %p34 = scmp.eq.s32.totalorder %s15, 0
      %p35 = por %p33, %p34
      %p36 = scmp.ne.s32.totalorder %s25, %s28
      %p37 = scmp.eq.s32.totalorder %s20, 1
      %p38 = por %p36, %p37
      %p39 = scmp.ne.s32.totalorder %s28, %s29
      %p40 = scmp.eq.s32.totalorder %s20, 0
      %p41 = por %p39, %p40
      %p42 = scmp.ne.s32.totalorder %s28, %s29
      %p43 = scmp.eq.s32.totalorder %s21, 1
      %p44 = por %p42, %p43
      %p46 = scmp.ne.s32.totalorder %s29, %s45
      %p47 = scmp.eq.s32.totalorder %s21, 0
      %p48 = por %p46, %p47
      %s50 = sadd.s32 %s49, 1
      %p53 = scmp.eq.s32.totalorder %s15, 1
      %p54 = scmp.ne.s32.totalorder %s49, %s51
      %p55 = scmp.eq.s32.totalorder %s15, 0
      %p56 = por %p54, %p55
      %p57 = scmp.ne.s32.totalorder %s49, %s51
      %p58 = scmp.eq.s32.totalorder %s20, 1
      %p59 = por %p57, %p58
      %p60 = scmp.ne.s32.totalorder %s51, %s52
      %p61 = scmp.eq.s32.totalorder %s20, 0
      %p62 = por %p60, %p61
      %p63 = scmp.ne.s32.totalorder %s51, %s52
      %p64 = scmp.eq.s32.totalorder %s21, 1
      %p65 = por %p63, %p64
      %p67 = scmp.ne.s32.totalorder %s52, %s66
      %p68 = scmp.eq.s32.totalorder %s21, 0
      %p69 = por %p67, %p68
      %s71 = sadd.s32 %s70, 1
      %p74 = scmp.eq.s32.totalorder %s15, 1
      %p75 = scmp.ne.s32.totalorder %s70, %s72
      %p76 = scmp.eq.s32.totalorder %s15, 0
      %p77 = por %p75, %p76
      %p78 = scmp.ne.s32.totalorder %s70, %s72
      %p79 = scmp.eq.s32.totalorder %s20, 1
      %p80 = por %p78, %p79
      %p81 = scmp.ne.s32.totalorder %s72, %s73
      %p82 = scmp.eq.s32.totalorder %s20, 0
      %p83 = por %p81, %p82
      %p84 = scmp.ne.s32.totalorder %s72, %s73
      %p85 = scmp.eq.s32.totalorder %s21, 1
      %p86 = por %p84, %p85
      %p88 = scmp.ne.s32.totalorder %s73, %s87
      %p89 = scmp.eq.s32.totalorder %s21, 0
      %p90 = por %p88, %p89
      %s92 = sadd.s32 %s91, 1
      %p95 = scmp.eq.s32.totalorder %s15, 1
      %p96 = scmp.ne.s32.totalorder %s91, %s93
      %p97 = scmp.eq.s32.totalorder %s15, 0
      %p98 = por %p96, %p97
      %p99 = scmp.ne.s32.totalorder %s91, %s93
      %p100 = scmp.eq.s32.totalorder %s20, 1
      %p101 = por %p99, %p100
      %p102 = scmp.ne.s32.totalorder %s93, %s94
      %p103 = scmp.eq.s32.totalorder %s20, 0
      %p104 = por %p102, %p103
      %p105 = scmp.ne.s32.totalorder %s93, %s94
      %p106 = scmp.eq.s32.totalorder %s21, 1
      %p107 = por %p105, %p106
      %p109 = scmp.ne.s32.totalorder %s94, %s108
      %p110 = scmp.eq.s32.totalorder %s21, 0
      %p111 = por %p109, %p110
      %s113 = sadd.s32 %s112, 1
      %p116 = scmp.eq.s32.totalorder %s15, 1
      %p117 = scmp.ne.s32.totalorder %s112, %s114
      %p118 = scmp.eq.s32.totalorder %s15, 0
      %p119 = por %p117, %p118
      %p120 = scmp.ne.s32.totalorder %s112, %s114
      %p121 = scmp.eq.s32.totalorder %s20, 1
      %p122 = por %p120, %p121
      %p123 = scmp.ne.s32.totalorder %s114, %s115
      %p124 = scmp.eq.s32.totalorder %s20, 0
      %p125 = por %p123, %p124
      %p126 = scmp.ne.s32.totalorder %s114, %s115
      %p127 = scmp.eq.s32.totalorder %s21, 1
      %p128 = por %p126, %p127
      %p130 = scmp.ne.s32.totalorder %s115, %s129
      %p131 = scmp.eq.s32.totalorder %s21, 0
      %p132 = por %p130, %p131
      %s133 = ssub.s32 %s15, %s22
      %p134 = scmp.eq.s32.totalorder %s133, 0
      %s136 = sadd.s32 %s135, 1
      %s137 = scalar_select %p134, %s135, %s136
      %p140 = pneg %p134
      %p141 = scmp.eq.s32.totalorder %s15, 1
      %p142 = por %p140, %p141
      %p143 = scmp.ne.s32.totalorder %s135, %s138
      %p144 = scmp.eq.s32.totalorder %s15, 0
      %p145 = por %p143, %p144
      %p146 = scmp.ne.s32.totalorder %s135, %s138
      %p147 = scmp.eq.s32.totalorder %s20, 1
      %p148 = por %p146, %p147
      %p149 = scmp.ne.s32.totalorder %s138, %s139
      %p150 = scmp.eq.s32.totalorder %s20, 0
      %p151 = por %p149, %p150
      %p152 = scmp.ne.s32.totalorder %s138, %s139
      %p153 = scmp.eq.s32.totalorder %s21, 1
      %p154 = por %p152, %p153
      %p156 = scmp.ne.s32.totalorder %s139, %s155
      %p157 = scmp.eq.s32.totalorder %s21, 0
      %p158 = por %p156, %p157
      %p159 = scmp.le.s32.totalorder 1, %s15
      %p160 = scmp.lt.s32.totalorder %s15, 3
      %p161 = pnand %p159, %p160
      %p162 = pneg %p161
      // Predicated region
      $region9: #{tpu_custom_call.1} parent=5 // pred_check
        _
      $region10: #{tpu_custom_call.1} parent=5 // pred_check_branch
        %164 = sbr.rel (%p161) target = $region12
      $region11: #{tpu_custom_call.1} parent=5 // pred_region
        %s165 = ssub.s32 %s15, 1
        // Predicated region
        $region13: #{tpu_custom_call.1} parent=11 // pred_check
          %p166 = pneg %p62
        $region14: #{tpu_custom_call.1} parent=11 // pred_check_branch
          %168 = sbr.rel (%p166) target = $region16
        $region15: #{tpu_custom_call.1} parent=11 // pred_region
          _
        $region16: #{tpu_custom_call.1} parent=11 // pred_fallthru
          _
        // Predicated region
        $region17: #{tpu_custom_call.1} parent=11 // pred_check
          %p169 = pneg %p83
        $region18: #{tpu_custom_call.1} parent=11 // pred_check_branch
          %171 = sbr.rel (%p169) target = $region20
        $region19: #{tpu_custom_call.1} parent=11 // pred_region
          _
        $region20: #{tpu_custom_call.1} parent=11 // pred_fallthru
          _
        // Predicated region
        $region21: #{tpu_custom_call.1} parent=11 // pred_check
          %p172 = pneg %p104
        $region22: #{tpu_custom_call.1} parent=11 // pred_check_branch
          %174 = sbr.rel (%p172) target = $region24
        $region23: #{tpu_custom_call.1} parent=11 // pred_region
          _
        $region24: #{tpu_custom_call.1} parent=11 // pred_fallthru
          _
        // Predicated region
        $region25: #{tpu_custom_call.1} parent=11 // pred_check
          %p175 = pneg %p125
        $region26: #{tpu_custom_call.1} parent=11 // pred_check_branch
          %177 = sbr.rel (%p175) target = $region28
        $region27: #{tpu_custom_call.1} parent=11 // pred_region
          _
        $region28: #{tpu_custom_call.1} parent=11 // pred_fallthru
          _
      $region12: #{tpu_custom_call.1} parent=5 // pred_fallthru
        _
      %p178 = scmp.lt.s32.totalorder %s15, 2
      // Predicated region
      $region29: #{tpu_custom_call.1} parent=5 // pred_check
        %p179 = pneg %p178
      $region30: #{tpu_custom_call.1} parent=5 // pred_check_branch
        %181 = sbr.rel (%p179) target = $region32
      $region31: #{tpu_custom_call.1} parent=5 // pred_region
        // Predicated region
        $region33: #{tpu_custom_call.1} parent=31 // pred_check
          %p182 = pneg %p35
        $region34: #{tpu_custom_call.1} parent=31 // pred_check_branch
          %184 = sbr.rel (%p182) target = $region36
        $region35: #{tpu_custom_call.1} parent=31 // pred_region
          %s185 = smul.u32 64, %s15
          %p186 = scmp.lt.s32.totalorder %s185, 127
          %s187 = scalar_select %p186, %s185, 127
          %s188 = smul.addr %s187, 8
          %s189 = scalar_lea.vmem %s0, %s188
          %s190 = smul.u32 64, %s15
        $region36: #{tpu_custom_call.1} parent=31 // pred_fallthru
          _
      $region32: #{tpu_custom_call.1} parent=5 // pred_fallthru
        _
      %p191 = scmp.le.s32.totalorder 1, %s15
      %p192 = scmp.lt.s32.totalorder %s15, 3
      %p193 = pnand %p191, %p192
      %p194 = pneg %p193
      // Predicated region
      $region37: #{tpu_custom_call.1} parent=5 // pred_check
        _
      $region38: #{tpu_custom_call.1} parent=5 // pred_check_branch
        %196 = sbr.rel (%p193) target = $region40
      $region39: #{tpu_custom_call.1} parent=5 // pred_region
        %s197 = ssub.s32 %s15, 1
        %s198 = smul.u32 64, %s20
        %p199 = scmp.lt.s32.totalorder %s198, 127
        %s200 = scalar_select %p199, %s198, 127
        %s201 = smul.addr %s200, 8
        %s202 = scalar_lea.vmem %s0, %s201
        %p203 = pneg %p41
        %p204 = pneg %p38
        %p205 = pneg %p62
        %p206 = pneg %p59
        %p207 = pneg %p83
        %p208 = pneg %p80
        %p209 = pneg %p104
        %p210 = pneg %p101
        %p211 = pneg %p125
        %p212 = pneg %p122
        %p213 = pneg %p151
        %p214 = pneg %p148
        %s215 = sand.u32 %s138, 1
        %s216 = scalar_lea.sflag [#allocation4], %s215
        %s217 = sand.u32 %s138, 1
        %s218 = smul.addr %s217, 4
        %s219 = scalar_lea.vmem [#allocation3], %s218
        %s220 = smul.u32 64, %s20
        %p221 = scmp.lt.s32.totalorder %s220, 127
        %s222 = scalar_select %p221, %s220, 127
        %s223 = smul.addr %s222, 8
        %s224 = scalar_lea.vmem %s0, %s223
        %s225 = smul.u32 64, %s20
        %s226 = smul.u32 4, %s20
        %v228 = vld [vmem:[%s224] sm:$0xff]
        %v229 = vld [vmem:[%s224 + $0x8] sm:$0xff]
        %v230 = vld [vmem:[%s224 + $0x10] sm:$0xff]
        %v231 = vld [vmem:[%s224 + $0x18] sm:$0xff]
        %v232 = vld [vmem:[%s224 + $0x20] sm:$0xff]
        %v233 = vld [vmem:[%s224 + $0x28] sm:$0xff]
        %v234 = vld [vmem:[%s224 + $0x30] sm:$0xff]
        %v235 = vld [vmem:[%s224 + $0x38] sm:$0xff]
        %v236 = vld [vmem:[%s224 + $0x40] sm:$0xff]
        %v237 = vld [vmem:[%s224 + $0x48] sm:$0xff]
        %v238 = vld [vmem:[%s224 + $0x50] sm:$0xff]
        %v239 = vld [vmem:[%s224 + $0x58] sm:$0xff]
        %v240 = vld [vmem:[%s224 + $0x60] sm:$0xff]
        %v241 = vld [vmem:[%s224 + $0x68] sm:$0xff]
        %v242 = vld [vmem:[%s224 + $0x70] sm:$0xff]
        %v243 = vld [vmem:[%s224 + $0x78] sm:$0xff]
        %v244 = vld [vmem:[%s224 + $0x80] sm:$0xff]
        %v245 = vld [vmem:[%s224 + $0x88] sm:$0xff]
        %v246 = vld [vmem:[%s224 + $0x90] sm:$0xff]
        %v247 = vld [vmem:[%s224 + $0x98] sm:$0xff]
        %v248 = vld [vmem:[%s224 + $0xa0] sm:$0xff]
        %v249 = vld [vmem:[%s224 + $0xa8] sm:$0xff]
        %v250 = vld [vmem:[%s224 + $0xb0] sm:$0xff]
        %v251 = vld [vmem:[%s224 + $0xb8] sm:$0xff]
        %v252 = vld [vmem:[%s224 + $0xc0] sm:$0xff]
        %v253 = vld [vmem:[%s224 + $0xc8] sm:$0xff]
        %v254 = vld [vmem:[%s224 + $0xd0] sm:$0xff]
        %v255 = vld [vmem:[%s224 + $0xd8] sm:$0xff]
        %v256 = vld [vmem:[%s224 + $0xe0] sm:$0xff]
        %v257 = vld [vmem:[%s224 + $0xe8] sm:$0xff]
        %v258 = vld [vmem:[%s224 + $0xf0] sm:$0xff]
        %v259 = vld [vmem:[%s224 + $0xf8] sm:$0xff]
        %v260 = vld [vmem:[%s224 + $0x100] sm:$0xff]
        %v261 = vld [vmem:[%s224 + $0x108] sm:$0xff]
        %v262 = vld [vmem:[%s224 + $0x110] sm:$0xff]
        %v263 = vld [vmem:[%s224 + $0x118] sm:$0xff]
        %v264 = vld [vmem:[%s224 + $0x120] sm:$0xff]
        %v265 = vld [vmem:[%s224 + $0x128] sm:$0xff]
        %v266 = vld [vmem:[%s224 + $0x130] sm:$0xff]
        %v267 = vld [vmem:[%s224 + $0x138] sm:$0xff]
        %v268 = vld [vmem:[%s224 + $0x140] sm:$0xff]
        %v269 = vld [vmem:[%s224 + $0x148] sm:$0xff]
        %v270 = vld [vmem:[%s224 + $0x150] sm:$0xff]
        %v271 = vld [vmem:[%s224 + $0x158] sm:$0xff]
        %v272 = vld [vmem:[%s224 + $0x160] sm:$0xff]
        %v273 = vld [vmem:[%s224 + $0x168] sm:$0xff]
        %v274 = vld [vmem:[%s224 + $0x170] sm:$0xff]
        %v275 = vld [vmem:[%s224 + $0x178] sm:$0xff]
        %v276 = vld [vmem:[%s224 + $0x180] sm:$0xff]
        %v277 = vld [vmem:[%s224 + $0x188] sm:$0xff]
        %v278 = vld [vmem:[%s224 + $0x190] sm:$0xff]
        %v279 = vld [vmem:[%s224 + $0x198] sm:$0xff]
        %v280 = vld [vmem:[%s224 + $0x1a0] sm:$0xff]
        %v281 = vld [vmem:[%s224 + $0x1a8] sm:$0xff]
        %v282 = vld [vmem:[%s224 + $0x1b0] sm:$0xff]
        %v283 = vld [vmem:[%s224 + $0x1b8] sm:$0xff]
        %v284 = vld [vmem:[%s224 + $0x1c0] sm:$0xff]
        %v285 = vld [vmem:[%s224 + $0x1c8] sm:$0xff]
        %v286 = vld [vmem:[%s224 + $0x1d0] sm:$0xff]
        %v287 = vld [vmem:[%s224 + $0x1d8] sm:$0xff]
        %v288 = vld [vmem:[%s224 + $0x1e0] sm:$0xff]
        %v289 = vld [vmem:[%s224 + $0x1e8] sm:$0xff]
        %v290 = vld [vmem:[%s224 + $0x1f0] sm:$0xff]
        %v291 = vld [vmem:[%s224 + $0x1f8] sm:$0xff]
        %v292 = vpack.c.bf16 %v229, %v228
        %v293 = vpack.c.bf16 %v231, %v230
        %v294 = vpack.c.bf16 %v233, %v232
        %v295 = vpack.c.bf16 %v235, %v234
        %v296 = vpack.c.bf16 %v237, %v236
        %v297 = vpack.c.bf16 %v239, %v238
        %v298 = vpack.c.bf16 %v241, %v240
        %v299 = vpack.c.bf16 %v243, %v242
        %v300 = vpack.c.bf16 %v245, %v244
        %v301 = vpack.c.bf16 %v247, %v246
        %v302 = vpack.c.bf16 %v249, %v248
        %v303 = vpack.c.bf16 %v251, %v250
        %v304 = vpack.c.bf16 %v253, %v252
        %v305 = vpack.c.bf16 %v255, %v254
        %v306 = vpack.c.bf16 %v257, %v256
        %v307 = vpack.c.bf16 %v259, %v258
        %v308 = vpack.c.bf16 %v261, %v260
        %v309 = vpack.c.bf16 %v263, %v262
        %v310 = vpack.c.bf16 %v265, %v264
        %v311 = vpack.c.bf16 %v267, %v266
        %v312 = vpack.c.bf16 %v269, %v268
        %v313 = vpack.c.bf16 %v271, %v270
        %v314 = vpack.c.bf16 %v273, %v272
        %v315 = vpack.c.bf16 %v275, %v274
        %v316 = vpack.c.bf16 %v277, %v276
        %v317 = vpack.c.bf16 %v279, %v278
        %v318 = vpack.c.bf16 %v281, %v280
        %v319 = vpack.c.bf16 %v283, %v282
        %v320 = vpack.c.bf16 %v285, %v284
        %v321 = vpack.c.bf16 %v287, %v286
        %v322 = vpack.c.bf16 %v289, %v288
        %v323 = vpack.c.bf16 %v291, %v290
        %v324 = vld [vmem:[%s1] sm:$0xf]
        %v325 = vld [vmem:[%s1 + $0x4] sm:$0xf]
        %v326 = vld [vmem:[%s1 + $0x8] sm:$0xf]
        %v327 = vld [vmem:[%s1 + $0xc] sm:$0xf]
        %v328 = vld [vmem:[%s1 + $0x10] sm:$0xf]
        %v329 = vld [vmem:[%s1 + $0x14] sm:$0xf]
        %v330 = vld [vmem:[%s1 + $0x18] sm:$0xf]
        %v331 = vld [vmem:[%s1 + $0x1c] sm:$0xf]
        %v332 = vld [vmem:[%s2] sm:$0xff]
        %v333 = vld [vmem:[%s2 + $0x8] sm:$0xff]
        %v334 = vld [vmem:[%s2 + $0x10] sm:$0xff]
        %v335 = vld [vmem:[%s2 + $0x18] sm:$0xff]
        %v336 = vld [vmem:[%s2 + $0x20] sm:$0xff]
        %v337 = vld [vmem:[%s2 + $0x28] sm:$0xff]
        %v338 = vld [vmem:[%s2 + $0x30] sm:$0xff]
        %v339 = vld [vmem:[%s2 + $0x38] sm:$0xff]
        %341 = vset.pattern.permute.xlu0 0
        %342 = vperm.xlu0 %341, %v332
        %v343 = vpop.permute.xlu0 %342
        %346 = vset.pattern.permute.xlu0 0
        %347 = vperm.xlu0 %346, %v333
        %v348 = vpop.permute.xlu0 %347
        %351 = vset.pattern.permute.xlu0 0
        %352 = vperm.xlu0 %351, %v334
        %v353 = vpop.permute.xlu0 %352
        %356 = vset.pattern.permute.xlu0 0
        %357 = vperm.xlu0 %356, %v335
        %v358 = vpop.permute.xlu0 %357
        %361 = vset.pattern.permute.xlu0 0
        %362 = vperm.xlu0 %361, %v336
        %v363 = vpop.permute.xlu0 %362
        %366 = vset.pattern.permute.xlu0 0
        %367 = vperm.xlu0 %366, %v337
        %v368 = vpop.permute.xlu0 %367
        %371 = vset.pattern.permute.xlu0 0
        %372 = vperm.xlu0 %371, %v338
        %v373 = vpop.permute.xlu0 %372
        %376 = vset.pattern.permute.xlu0 0
        %377 = vperm.xlu0 %376, %v339
        %v378 = vpop.permute.xlu0 %377
        %v388 = vunpack.c.l.b16 %v324
        %v389 = vunpack.c.l.b16 %v325
        %v390 = vunpack.c.l.b16 %v326
        %v391 = vunpack.c.l.b16 %v327
        %v392 = vunpack.c.l.b16 %v328
        %v393 = vunpack.c.l.b16 %v329
        %v394 = vunpack.c.l.b16 %v330
        %v395 = vunpack.c.l.b16 %v331
        %v396 = vpack.c.b16 %v389, %v388
        %v397 = vpack.c.b16 %v391, %v390
        %v398 = vpack.c.b16 %v393, %v392
        %v399 = vpack.c.b16 %v395, %v394
        %vm400 = vcmask 261120
        %v402 = vsel %vm400, %v396, 0
        %v405 = vsel %vm400, %v397, 0
        %v408 = vsel %vm400, %v398, 0
        %v411 = vsel %vm400, %v399, 0
        %v414 = vsel %vm400, %v292, 0
        %v417 = vsel %vm400, %v293, 0
        %v420 = vsel %vm400, %v294, 0
        %v423 = vsel %vm400, %v295, 0
        %v426 = vsel %vm400, %v296, 0
        %v429 = vsel %vm400, %v297, 0
        %v432 = vsel %vm400, %v298, 0
        %v435 = vsel %vm400, %v299, 0
        %v438 = vsel %vm400, %v300, 0
        %v441 = vsel %vm400, %v301, 0
        %v444 = vsel %vm400, %v302, 0
        %v447 = vsel %vm400, %v303, 0
        %v450 = vsel %vm400, %v304, 0
        %v453 = vsel %vm400, %v305, 0
        %v456 = vsel %vm400, %v306, 0
        %v459 = vsel %vm400, %v307, 0
        %v462 = vsel %vm400, %v308, 0
        %v465 = vsel %vm400, %v309, 0
        %v468 = vsel %vm400, %v310, 0
        %v471 = vsel %vm400, %v311, 0
        %v474 = vsel %vm400, %v312, 0
        %v477 = vsel %vm400, %v313, 0
        %v480 = vsel %vm400, %v314, 0
        %v483 = vsel %vm400, %v315, 0
        %v486 = vsel %vm400, %v316, 0
        %v489 = vsel %vm400, %v317, 0
        %v492 = vsel %vm400, %v318, 0
        %v495 = vsel %vm400, %v319, 0
        %v498 = vsel %vm400, %v320, 0
        %v501 = vsel %vm400, %v321, 0
        %v504 = vsel %vm400, %v322, 0
        %v507 = vsel %vm400, %v323, 0
        %509 = vmatprep.subr.bf16.mxu0 0
        %510 = vmatpush1.bf16.xpose.msra.mxu0 %v414
        %511 = vmatprep.subr.bf16.mxu0 0
        %512 = vmatpush1.bf16.xpose.msra.mxu0 %v417
        %513 = vmatprep.subr.bf16.mxu0 0
        %514 = vmatpush1.bf16.xpose.msra.mxu0 %v420
        %515 = vmatprep.subr.bf16.mxu0 0
        %516 = vmatpush1.bf16.xpose.msra.mxu0 %v423
        %517 = vmatprep.subr.bf16.mxu0 0
        %518 = vmatpush1.bf16.xpose.msra.mxu0 %v426
        %519 = vmatprep.subr.bf16.mxu0 0
        %520 = vmatpush1.bf16.xpose.msra.mxu0 %v429
        %521 = vmatprep.subr.bf16.mxu0 0
        %522 = vmatpush1.bf16.xpose.msra.mxu0 %v432
        %523 = vmatprep.subr.bf16.mxu0 0
        %524 = vmatpush1.bf16.xpose.msra.mxu0 %v435
        %525 = vmatprep.subr.bf16.mxu0 0
        %526 = vmatpush1.bf16.xpose.msra.mxu0 %v438
        %527 = vmatprep.subr.bf16.mxu0 0
        %528 = vmatpush1.bf16.xpose.msra.mxu0 %v441
        %529 = vmatprep.subr.bf16.mxu0 0
        %530 = vmatpush1.bf16.xpose.msra.mxu0 %v444
        %531 = vmatprep.subr.bf16.mxu0 0
        %532 = vmatpush1.bf16.xpose.msra.mxu0 %v447
        %533 = vmatprep.subr.bf16.mxu0 0
        %534 = vmatpush1.bf16.xpose.msra.mxu0 %v450
        %535 = vmatprep.subr.bf16.mxu0 0
        %536 = vmatpush1.bf16.xpose.msra.mxu0 %v453
        %537 = vmatprep.subr.bf16.mxu0 0
        %538 = vmatpush1.bf16.xpose.msra.mxu0 %v456
        %539 = vmatprep.subr.bf16.mxu0 0
        %540 = vmatpush1.bf16.xpose.msra.mxu0 %v459
        %541 = vmatprep.mubr.bf16.mxu0 0
        %542 = vmatmul.mubr.bf16.gmra.mrb[0].mxu0 %v402
        %v543 = vpop.f32.mrb[0].mxu0
        %v544 = vadd.f32 %v343, %v543
        %v545 = vpop.f32.mrb[0].mxu0
        %v546 = vadd.f32 %v343, %v545
        %v547 = vpop.f32.mrb[0].mxu0
        %v548 = vadd.f32 %v348, %v547
        %v549 = vpop.f32.mrb[0].mxu0
        %v550 = vadd.f32 %v348, %v549
        %551 = vmatprep.mubr.bf16.mxu0 0
        %552 = vmatmul.mubr.bf16.gmra.mrb[0].mxu0 %v405
        %v553 = vpop.f32.mrb[0].mxu0
        %v554 = vadd.f32 %v353, %v553
        %v555 = vpop.f32.mrb[0].mxu0
        %v556 = vadd.f32 %v353, %v555
        %v557 = vpop.f32.mrb[0].mxu0
        %v558 = vadd.f32 %v358, %v557
        %v559 = vpop.f32.mrb[0].mxu0
        %v560 = vadd.f32 %v358, %v559
        %561 = vmatprep.mubr.bf16.mxu0 0
        %562 = vmatmul.mubr.bf16.gmra.mrb[0].mxu0 %v408
        %v563 = vpop.f32.mrb[0].mxu0
        %v564 = vadd.f32 %v363, %v563
        %v565 = vpop.f32.mrb[0].mxu0
        %v566 = vadd.f32 %v363, %v565
        %v567 = vpop.f32.mrb[0].mxu0
        %v568 = vadd.f32 %v368, %v567
        %v569 = vpop.f32.mrb[0].mxu0
        %v570 = vadd.f32 %v368, %v569
        %571 = vmatprep.mubr.bf16.mxu0 0
        %572 = vmatmul.mubr.bf16.gmra.mrb[0].mxu0 %v411
        %v573 = vpop.f32.mrb[0].mxu0
        %v574 = vadd.f32 %v373, %v573
        %v575 = vpop.f32.mrb[0].mxu0
        %v576 = vadd.f32 %v373, %v575
        %v577 = vpop.f32.mrb[0].mxu0
        %v578 = vadd.f32 %v378, %v577
        %v579 = vpop.f32.mrb[0].mxu0
        %v580 = vadd.f32 %v378, %v579
        %581 = vdwg.mxu0
        %582 = vmatprep.subr.bf16.mxu0 0
        %583 = vmatpush1.bf16.xpose.msra.mxu0 %v462
        %584 = vmatprep.subr.bf16.mxu0 0
        %585 = vmatpush1.bf16.xpose.msra.mxu0 %v465
        %586 = vmatprep.subr.bf16.mxu0 0
        %587 = vmatpush1.bf16.xpose.msra.mxu0 %v468
        %588 = vmatprep.subr.bf16.mxu0 0
        %589 = vmatpush1.bf16.xpose.msra.mxu0 %v471
        %590 = vmatprep.subr.bf16.mxu0 0
        %591 = vmatpush1.bf16.xpose.msra.mxu0 %v474
        %592 = vmatprep.subr.bf16.mxu0 0
        %593 = vmatpush1.bf16.xpose.msra.mxu0 %v477
        %594 = vmatprep.subr.bf16.mxu0 0
        %595 = vmatpush1.bf16.xpose.msra.mxu0 %v480
        %596 = vmatprep.subr.bf16.mxu0 0
        %597 = vmatpush1.bf16.xpose.msra.mxu0 %v483
        %598 = vmatprep.subr.bf16.mxu0 0
        %599 = vmatpush1.bf16.xpose.msra.mxu0 %v486
        %600 = vmatprep.subr.bf16.mxu0 0
        %601 = vmatpush1.bf16.xpose.msra.mxu0 %v489
        %602 = vmatprep.subr.bf16.mxu0 0
        %603 = vmatpush1.bf16.xpose.msra.mxu0 %v492
        %604 = vmatprep.subr.bf16.mxu0 0
        %605 = vmatpush1.bf16.xpose.msra.mxu0 %v495
        %606 = vmatprep.subr.bf16.mxu0 0
        %607 = vmatpush1.bf16.xpose.msra.mxu0 %v498
        %608 = vmatprep.subr.bf16.mxu0 0
        %609 = vmatpush1.bf16.xpose.msra.mxu0 %v501
        %610 = vmatprep.subr.bf16.mxu0 0
        %611 = vmatpush1.bf16.xpose.msra.mxu0 %v504
        %612 = vmatprep.subr.bf16.mxu0 0
        %613 = vmatpush1.bf16.xpose.msra.mxu0 %v507
        %614 = vmatprep.mubr.bf16.mxu0 0
        %615 = vmatmul.mubr.bf16.gmra.mrb[0].mxu0 %v402
        %v616 = vpop.f32.mrb[0].mxu0
        %v617 = vadd.f32 %v343, %v616
        %v618 = vpop.f32.mrb[0].mxu0
        %v619 = vadd.f32 %v343, %v618
        %v620 = vpop.f32.mrb[0].mxu0
        %v621 = vadd.f32 %v348, %v620
        %v622 = vpop.f32.mrb[0].mxu0
        %v623 = vadd.f32 %v348, %v622
        %624 = vmatprep.mubr.bf16.mxu0 0
        %625 = vmatmul.mubr.bf16.gmra.mrb[0].mxu0 %v405
        %v626 = vpop.f32.mrb[0].mxu0
        %v627 = vadd.f32 %v353, %v626
        %v628 = vpop.f32.mrb[0].mxu0
        %v629 = vadd.f32 %v353, %v628
        %v630 = vpop.f32.mrb[0].mxu0
        %v631 = vadd.f32 %v358, %v630
        %v632 = vpop.f32.mrb[0].mxu0
        %v633 = vadd.f32 %v358, %v632
        %634 = vmatprep.mubr.bf16.mxu0 0
        %635 = vmatmul.mubr.bf16.gmra.mrb[0].mxu0 %v408
        %v636 = vpop.f32.mrb[0].mxu0
        %v637 = vadd.f32 %v363, %v636
        %v638 = vpop.f32.mrb[0].mxu0
        %v639 = vadd.f32 %v363, %v638
        %v640 = vpop.f32.mrb[0].mxu0
        %v641 = vadd.f32 %v368, %v640
        %v642 = vpop.f32.mrb[0].mxu0
        %v643 = vadd.f32 %v368, %v642
        %644 = vmatprep.mubr.bf16.mxu0 0
        %645 = vmatmul.mubr.bf16.gmra.mrb[0].mxu0 %v411
        %v646 = vpop.f32.mrb[0].mxu0
        %v647 = vadd.f32 %v373, %v646
        %v648 = vpop.f32.mrb[0].mxu0
        %v649 = vadd.f32 %v373, %v648
        %v650 = vpop.f32.mrb[0].mxu0
        %v651 = vadd.f32 %v378, %v650
        %v652 = vpop.f32.mrb[0].mxu0
        %v653 = vadd.f32 %v378, %v652
        %654 = vdwg.mxu0
        %v655 = vmax.f32 %v544, 0.0
        %v656 = vmax.f32 %v546, 0.0
        %v657 = vmax.f32 %v617, 0.0
        %v658 = vmax.f32 %v619, 0.0
        %v659 = vmax.f32 %v548, 0.0
        %v660 = vmax.f32 %v550, 0.0
        %v661 = vmax.f32 %v621, 0.0
        %v662 = vmax.f32 %v623, 0.0
        %v663 = vmax.f32 %v554, 0.0
        %v664 = vmax.f32 %v556, 0.0
        %v665 = vmax.f32 %v627, 0.0
        %v666 = vmax.f32 %v629, 0.0
        %v667 = vmax.f32 %v558, 0.0
        %v668 = vmax.f32 %v560, 0.0
        %v669 = vmax.f32 %v631, 0.0
        %v670 = vmax.f32 %v633, 0.0
        %v671 = vmax.f32 %v564, 0.0
        %v672 = vmax.f32 %v566, 0.0
        %v673 = vmax.f32 %v637, 0.0
        %v674 = vmax.f32 %v639, 0.0
        %v675 = vmax.f32 %v568, 0.0
        %v676 = vmax.f32 %v570, 0.0
        %v677 = vmax.f32 %v641, 0.0
        %v678 = vmax.f32 %v643, 0.0
        %v679 = vmax.f32 %v574, 0.0
        %v680 = vmax.f32 %v576, 0.0
        %v681 = vmax.f32 %v647, 0.0
        %v682 = vmax.f32 %v649, 0.0
        %v683 = vmax.f32 %v578, 0.0
        %v684 = vmax.f32 %v580, 0.0
        %v685 = vmax.f32 %v651, 0.0
        %v686 = vmax.f32 %v653, 0.0
        %v687 = vld [vmem:[%s3] sm:$0xff]
        %v688 = vld [vmem:[%s3 + $0x8] sm:$0xff]
        %v689 = vld [vmem:[%s3 + $0x10] sm:$0xff]
        %v690 = vld [vmem:[%s3 + $0x18] sm:$0xff]
        %v691 = vld [vmem:[%s3 + $0x20] sm:$0xff]
        %v692 = vld [vmem:[%s3 + $0x28] sm:$0xff]
        %v693 = vld [vmem:[%s3 + $0x30] sm:$0xff]
        %v694 = vld [vmem:[%s3 + $0x38] sm:$0xff]
        %696 = vset.pattern.permute.xlu0 0
        %697 = vperm.xlu0 %696, %v687
        %v698 = vpop.permute.xlu0 %697
        %701 = vset.pattern.permute.xlu0 0
        %702 = vperm.xlu0 %701, %v688
        %v703 = vpop.permute.xlu0 %702
        %706 = vset.pattern.permute.xlu0 0
        %707 = vperm.xlu0 %706, %v689
        %v708 = vpop.permute.xlu0 %707
        %711 = vset.pattern.permute.xlu0 0
        %712 = vperm.xlu0 %711, %v690
        %v713 = vpop.permute.xlu0 %712
        %716 = vset.pattern.permute.xlu0 0
        %717 = vperm.xlu0 %716, %v691
        %v718 = vpop.permute.xlu0 %717
        %721 = vset.pattern.permute.xlu0 0
        %722 = vperm.xlu0 %721, %v692
        %v723 = vpop.permute.xlu0 %722
        %726 = vset.pattern.permute.xlu0 0
        %727 = vperm.xlu0 %726, %v693
        %v728 = vpop.permute.xlu0 %727
        %731 = vset.pattern.permute.xlu0 0
        %732 = vperm.xlu0 %731, %v694
        %v733 = vpop.permute.xlu0 %732
        %v735 = vmul.f32 %v655, %v698
        %v736 = vmul.f32 %v656, %v698
        %v737 = vmul.f32 %v657, %v698
        %v738 = vmul.f32 %v658, %v698
        %v739 = vmul.f32 %v659, %v703
        %v740 = vmul.f32 %v660, %v703
        %v741 = vmul.f32 %v661, %v703
        %v742 = vmul.f32 %v662, %v703
        %v743 = vmul.f32 %v663, %v708
        %v744 = vmul.f32 %v664, %v708
        %v745 = vmul.f32 %v665, %v708
        %v746 = vmul.f32 %v666, %v708
        %v747 = vmul.f32 %v667, %v713
        %v748 = vmul.f32 %v668, %v713
        %v749 = vmul.f32 %v669, %v713
        %v750 = vmul.f32 %v670, %v713
        %v751 = vmul.f32 %v671, %v718
        %v752 = vmul.f32 %v672, %v718
        %v753 = vmul.f32 %v673, %v718
        %v754 = vmul.f32 %v674, %v718
        %v755 = vmul.f32 %v675, %v723
        %v756 = vmul.f32 %v676, %v723
        %v757 = vmul.f32 %v677, %v723
        %v758 = vmul.f32 %v678, %v723
        %v759 = vmul.f32 %v679, %v728
        %v760 = vmul.f32 %v680, %v728
        %v761 = vmul.f32 %v681, %v728
        %v762 = vmul.f32 %v682, %v728
        %v763 = vmul.f32 %v683, %v733
        %v764 = vmul.f32 %v684, %v733
        %v765 = vmul.f32 %v685, %v733
        %v766 = vmul.f32 %v686, %v733
        %v767 = vadd.f32 %v735, %v739
        %v768 = vadd.f32 %v767, %v743
        %v769 = vadd.f32 %v768, %v747
        %v770 = vadd.f32 %v769, %v751
        %v771 = vadd.f32 %v770, %v755
        %v772 = vadd.f32 %v771, %v759
        %v773 = vadd.f32 %v772, %v763
        %v774 = vrot.slane %v773, 4
        %v775 = vadd.f32 %v773, %v774
        %v776 = vrot.slane %v775, 2
        %v777 = vadd.f32 %v775, %v776
        %v778 = vrot.slane %v777, 1
        %v779 = vadd.f32 %v777, %v778
        %v780 = vadd.f32 %v736, %v740
        %v781 = vadd.f32 %v780, %v744
        %v782 = vadd.f32 %v781, %v748
        %v783 = vadd.f32 %v782, %v752
        %v784 = vadd.f32 %v783, %v756
        %v785 = vadd.f32 %v784, %v760
        %v786 = vadd.f32 %v785, %v764
        %v787 = vrot.slane %v786, 4
        %v788 = vadd.f32 %v786, %v787
        %v789 = vrot.slane %v788, 2
        %v790 = vadd.f32 %v788, %v789
        %v791 = vrot.slane %v790, 1
        %v792 = vadd.f32 %v790, %v791
        %v793 = vadd.f32 %v737, %v741
        %v794 = vadd.f32 %v793, %v745
        %v795 = vadd.f32 %v794, %v749
        %v796 = vadd.f32 %v795, %v753
        %v797 = vadd.f32 %v796, %v757
        %v798 = vadd.f32 %v797, %v761
        %v799 = vadd.f32 %v798, %v765
        %v800 = vrot.slane %v799, 4
        %v801 = vadd.f32 %v799, %v800
        %v802 = vrot.slane %v801, 2
        %v803 = vadd.f32 %v801, %v802
        %v804 = vrot.slane %v803, 1
        %v805 = vadd.f32 %v803, %v804
        %v806 = vadd.f32 %v738, %v742
        %v807 = vadd.f32 %v806, %v746
        %v808 = vadd.f32 %v807, %v750
        %v809 = vadd.f32 %v808, %v754
        %v810 = vadd.f32 %v809, %v758
        %v811 = vadd.f32 %v810, %v762
        %v812 = vadd.f32 %v811, %v766
        %v813 = vrot.slane %v812, 4
        %v814 = vadd.f32 %v812, %v813
        %v815 = vrot.slane %v814, 2
        %v816 = vadd.f32 %v814, %v815
        %v817 = vrot.slane %v816, 1
        %v818 = vadd.f32 %v816, %v817
        %s819 = sld [smem:[#allocation2]]
        %v820 = vstv %s819
        %v821 = vadd.f32 %v779, %v820
        %v822 = vadd.f32 %v792, %v820
        %v823 = vadd.f32 %v805, %v820
        %v824 = vadd.f32 %v818, %v820
        %v829 = vcombine.low %v821, %v822
        %v830 = vcombine.low %v823, %v824
        %v832 = vunpack.c.l.s4 1966171168
        %v833 = vunpack.c.0.s8 %v832
        %v834 = vlaneseq
        %v835 = vshrl.u32 %v834, 7
        %v836 = vsub.s32 %v833, %v835
        %v837 = vrot.slane %v829, %v836
        %v839 = vunpack.c.l.s4 1966171168
        %v840 = vunpack.c.0.s8 %v839
        %v841 = vlaneseq
        %v842 = vshrl.u32 %v841, 7
        %v843 = vsub.s32 %v840, %v842
        %v844 = vrot.slane %v830, %v843
        %v845 = vcombine.low %v837, %v844
        %v847 = vunpack.c.l.s4 1966171168
        %v848 = vunpack.c.0.s8 %v847
        %v849 = vlaneseq
        %v850 = vshrl.u32 %v849, 7
        %v851 = vsub.s32 %v848, %v850
        %v852 = vrot.slane %v845, %v851
        %v854 = vlaneseq
        %vm855 = vcmp.ge.s32.totalorder %v854, 0
        %vm856 = vcmp.lt.s32.totalorder %v854, 512
        %vm857 = vmand %vm855, %vm856
        %858 = vst.msk [vmem:[%s219] sm:$0xf] %vm857, %v852
        %s859 = sand.u32 %s138, 1
        %s860 = scalar_lea.sflag [#allocation4], %s859
        %s861 = sand.u32 %s138, 1
        %s862 = smul.addr %s861, 4
        %s863 = scalar_lea.vmem [#allocation3], %s862
        // Predicated region
        $region41: #{tpu_custom_call.1} parent=39 // pred_check
          %p864 = pneg %p148
        $region42: #{tpu_custom_call.1} parent=39 // pred_check_branch
          %866 = sbr.rel (%p864) target = $region44
        $region43: #{tpu_custom_call.1} parent=39 // pred_region
          %s867 = smul.u32 4, %s20
          %s869 = ssub.s32 64, 64
          %870 = vsyncadd %s860, %s869
          %s871 = smul.addr %s867, 16
          %s872 = scalar_lea.hbm %s5, %s871
          %s874 = sshll.u32 %s863, 4
          %s875 = int_to_ptr.vmem [resolvable:$true] %s874
          %877 = dma.vmem_to_hbm [thread:$0]  %s875, 64, %s872, %s860
        $region44: #{tpu_custom_call.1} parent=39 // pred_fallthru
          _
      $region40: #{tpu_custom_call.1} parent=5 // pred_fallthru
        _
      %p878 = scmp.le.s32.totalorder 2, %s15
      // Predicated region
      $region45: #{tpu_custom_call.1} parent=5 // pred_check
        %p879 = pneg %p878
      $region46: #{tpu_custom_call.1} parent=5 // pred_check_branch
        %881 = sbr.rel (%p879) target = $region48
      $region47: #{tpu_custom_call.1} parent=5 // pred_region
        %s882 = ssub.s32 %s15, 2
        // Predicated region
        $region49: #{tpu_custom_call.1} parent=47 // pred_check
          %p883 = pneg %p154
        $region50: #{tpu_custom_call.1} parent=47 // pred_check_branch
          %885 = sbr.rel (%p883) target = $region52
        $region51: #{tpu_custom_call.1} parent=47 // pred_region
          %s886 = sand.u32 %s139, 1
          %s887 = scalar_lea.sflag [#allocation4], %s886
          %s888 = sand.u32 %s139, 1
          %s889 = smul.addr %s888, 4
          %s890 = scalar_lea.vmem [#allocation3], %s889
          %891 = dma.done %s887, 64
        $region52: #{tpu_custom_call.1} parent=47 // pred_fallthru
          _
      $region48: #{tpu_custom_call.1} parent=5 // pred_fallthru
        _
    $region6: #{tpu_custom_call.1} parent=1 // loop_footer
      %s19 = sadd.s32 1, %s15
    $region7: #{tpu_custom_call.1} parent=1 // loop_footer_branch
      %14 = sbr.rel target = $region3
    $region8: #{tpu_custom_call.1} parent=1 // loop_exit
      _
    %892 = vsyncpa [#allocation4], 1
    %s893 = scalar_lea.sflag [#allocation4], 1
    %894 = vsyncpa %s893, 1

</llo_original>
